<compile_context>
chip_gen: v5e
topology: v5e:2x2
jax: 0.10.0
libtpu: 0.0.40
codegen_flags: <defaults>
</compile_context>

<pallas_src>
import functools

import numpy as np
import jax
import jax.numpy as jnp
from jax.experimental import pallas as pl
from jax.experimental.pallas import tpu as pltpu

# Small, forward-consistent STFT configuration (original module: 1024 / 4 / 1024).
FILTER_LENGTH = 64
N_OVERLAP = 4
HOP = FILTER_LENGTH // N_OVERLAP          # 16
WIN_LENGTH = FILTER_LENGTH                # == filter_length, so pad_center is a no-op
CUTOFF = FILTER_LENGTH // 2 + 1           # 33
R = FILTER_LENGTH // HOP                  # frames overlapping each hop-chunk (4)
PAD_HALF = 64                             # lane offset of the imag half in fused layouts
FUSED_LANES = 2 * PAD_HALF                # 128 (full lane width)
assert CUTOFF <= PAD_HALF


# ----------------------------------------------------------------------------
# Parameter setup (plain numpy glue, deterministic)
# ----------------------------------------------------------------------------
def _hann_periodic(n):
    return (0.5 - 0.5 * np.cos(2.0 * np.pi * np.arange(n) / n)).astype(np.float64)


def make_stft_params():
    fourier = np.fft.fft(np.eye(FILTER_LENGTH))
    fb = np.vstack([np.real(fourier[:CUTOFF]), np.imag(fourier[:CUTOFF])])  # (2*CUTOFF, FL)
    scale = FILTER_LENGTH / HOP
    inv = np.linalg.pinv(scale * fb).T                                      # (2*CUTOFF, FL)
    win = _hann_periodic(WIN_LENGTH)
    forward_basis = (fb * win[None, :]).astype(np.float32)
    inverse_basis = (inv * win[None, :]).astype(np.float32)
    return forward_basis, inverse_basis, win.astype(np.float32)


def window_sumsquare(win, n_frames):
    """librosa-style window-sum-square used by STFT.inverse (norm=None)."""
    n = FILTER_LENGTH + HOP * (n_frames - 1)
    x = np.zeros(n, dtype=np.float32)
    win_sq = (win.astype(np.float64) ** 2).astype(np.float32)
    for i in range(n_frames):
        s = i * HOP
        x[s:min(n, s + FILTER_LENGTH)] += win_sq[:max(0, min(FILTER_LENGTH, n - s))]
    return x


def _round_up(x, m):
    return ((x + m - 1) // m) * m


# ----------------------------------------------------------------------------
# Pallas kernel: fused STFT -> denoise -> iSTFT overlap-add for the whole batch
# ----------------------------------------------------------------------------
def denoiser_kernel(frames_ref, fb_ref, inv_ref, bias_ref, norm_ref, out_ref,
                    *, batch, rows_p):
    # Forward STFT: ONE fused matmul against the zero-padded [re | im] basis.
    #   lanes [0:CUTOFF] = real part, lanes [PAD_HALF:PAD_HALF+CUTOFF] = imag part.
    spec = jnp.dot(frames_ref[...], fb_ref[...],
                   preferred_element_type=jnp.float32)          # (B*rows_p, 128)

    # Magnitude: an XLU lane-rotation by PAD_HALF aligns im with re (and re with im),
    # so both halves hold the magnitude of their own bin; padded lanes stay zero.
    rolled = pltpu.roll(spec, shift=PAD_HALF, axis=1)
    mag = jnp.sqrt(spec * spec + rolled * rolled)

    # Denoise scale: clamp(mag - bias, 0) / mag with an EUP approx reciprocal
    # (replaces cos/sin/atan2 and the two divides of the reference formulation).
    nz = mag > 0.0
    safe = jnp.where(nz, mag, 1.0)
    ratio = jnp.where(
        nz,
        jnp.maximum(mag - bias_ref[...], 0.0) * pl.reciprocal(safe, approx=True),
        0.0)

    # Inverse STFT frame contributions: ONE fused matmul on the rescaled spectrum.
    contrib = jnp.dot(spec * ratio, inv_ref[...],
                      preferred_element_type=jnp.float32)       # (B*rows_p, FL)

    # Overlap-add (conv_transpose1d with stride=HOP) done in registers: the R
    # lane-slices of each batch's contrib are shifted down by j chunks (static
    # shifted adds) and summed; rows >= n_frames are zero-padded frames, so the
    # cropped tail contributes nothing.  Single store, no VMEM scratch / RMW.
    olas = []
    for b in range(batch):
        cb = contrib[b * rows_p:(b + 1) * rows_p]               # sublane-aligned slice
        acc = cb[:, 0:HOP]
        for j in range(1, R):
            piece = cb[:rows_p - j, j * HOP:(j + 1) * HOP]
            acc = acc + jnp.concatenate(
                [jnp.zeros((j, HOP), jnp.float32), piece], axis=0)
        olas.append(acc)
    ola = olas[0] if batch == 1 else jnp.concatenate(olas, axis=0)

    # Window-sum normalization (+ FL/HOP scale) folded into `norm` in glue.
    # TODO(synk): at this toy size this is one store per kernel invocation; with the
    # production 1024-tap config, regroup time so 128 contiguous samples sit on the
    # lane axis (lane-dense out_spec) before storing.
    out_ref[...] = ola * norm_ref[...]


# ----------------------------------------------------------------------------
# Wrapper
# ----------------------------------------------------------------------------
def denoiser_forward(audio, bias_spec, forward_basis, inverse_basis, win,
                     strength=0.1):
    B, num_samples = audio.shape
    pad = FILTER_LENGTH // 2

    # Reflect padding + im2col (XLA glue); kernel gets aligned (M, FL) frames.
    padded = jnp.pad(audio.astype(jnp.float32), ((0, 0), (pad, pad)),
                     mode='reflect')
    padded_len = num_samples + FILTER_LENGTH
    n_frames = (padded_len - FILTER_LENGTH) // HOP + 1
    n_chunks = n_frames - 1 + R                    # OLA length in HOP-chunks
    rows_p = _round_up(n_chunks, 8)                # >= n_frames + R - 1, multiple of 8

    idx = np.arange(n_frames)[:, None] * HOP + np.arange(FILTER_LENGTH)[None, :]
    frames = padded[:, idx]                                        # (B, n_frames, FL)
    frames = jnp.pad(frames, ((0, 0), (0, rows_p - n_frames), (0, 0)))
    frames = frames.reshape(B * rows_p, FILTER_LENGTH)

    # Fused, zero-padded bases: real at lanes [0:CUTOFF], imag at
    # lanes [PAD_HALF:PAD_HALF+CUTOFF]  ->  one full-128-lane matmul each way.
    fb_fused = np.zeros((FILTER_LENGTH, FUSED_LANES), np.float32)
    fb_fused[:, :CUTOFF] = forward_basis[:CUTOFF].T
    fb_fused[:, PAD_HALF:PAD_HALF + CUTOFF] = forward_basis[CUTOFF:].T
    inv_fused = np.zeros((FUSED_LANES, FILTER_LENGTH), np.float32)
    inv_fused[:CUTOFF] = inverse_basis[:CUTOFF]
    inv_fused[PAD_HALF:PAD_HALF + CUTOFF] = inverse_basis[CUTOFF:]

    # bias_spec has shape (1, CUTOFF, 1); fold `strength` in and duplicate into
    # both (re / im) halves of the fused lane layout.
    bias_row = (bias_spec[0, :, 0] * jnp.float32(strength)).astype(jnp.float32)
    bias_fused = jnp.zeros((1, FUSED_LANES), jnp.float32)
    bias_fused = bias_fused.at[0, :CUTOFF].set(bias_row)
    bias_fused = bias_fused.at[0, PAD_HALF:PAD_HALF + CUTOFF].set(bias_row)

    # Window-sum normalization + hop/filter scale, tiled per batch element.
    wsum = window_sumsquare(win, n_frames)
    tiny = np.finfo(np.float32).tiny
    scale = float(FILTER_LENGTH) / HOP
    norm_np = np.where(wsum > tiny, scale / wsum, scale).astype(np.float32)
    norm_np = norm_np.reshape(n_chunks, HOP)
    norm_np = np.pad(norm_np, ((0, rows_p - n_chunks), (0, 0)))
    norm = jnp.asarray(np.tile(norm_np, (B, 1)))                   # (B*rows_p, HOP)

    kernel = functools.partial(denoiser_kernel, batch=B, rows_p=rows_p)
    out = pl.pallas_call(
        kernel,
        out_shape=jax.ShapeDtypeStruct((B * rows_p, HOP), jnp.float32),
        grid=(1,),   # whole (tiny) batch folded into one step: no per-step overhead
        in_specs=[
            pl.BlockSpec((B * rows_p, FILTER_LENGTH), lambda i: (0, 0)),
            pl.BlockSpec((FILTER_LENGTH, FUSED_LANES), lambda i: (0, 0)),
            pl.BlockSpec((FUSED_LANES, FILTER_LENGTH), lambda i: (0, 0)),
            pl.BlockSpec((1, FUSED_LANES), lambda i: (0, 0)),
            pl.BlockSpec((B * rows_p, HOP), lambda i: (0, 0)),
        ],
        out_specs=pl.BlockSpec((B * rows_p, HOP), lambda i: (0, 0)),
        # TODO(synk): for the production config (filter_length=1024, seconds of
        # audio) add a frame-tile grid axis marked "parallel" (v7x: 2 TCs, 64 MiB
        # VMEM) and set vmem_limit_bytes explicitly.
        compiler_params=pltpu.CompilerParams(dimension_semantics=("arbitrary",)),
    )(frames, jnp.asarray(fb_fused), jnp.asarray(inv_fused), bias_fused, norm)

    full = out.reshape(B, rows_p * HOP)
    audio_denoised = full[:, pad:pad + num_samples]                # center crop
    return audio_denoised[:, None, :]                              # (B, 1, T)


# ----------------------------------------------------------------------------
# Pure-numpy reference (mirrors the PyTorch STFT/Denoiser math)
# ----------------------------------------------------------------------------
def reference_forward(audio, bias_spec, forward_basis, inverse_basis, win,
                      strength=0.1):
    audio = np.asarray(audio, np.float32)
    bias = np.asarray(bias_spec, np.float32)
    B, T = audio.shape
    pad = FILTER_LENGTH // 2
    padded = np.pad(audio, ((0, 0), (pad, pad)), mode='reflect')
    n_frames = (padded.shape[1] - FILTER_LENGTH) // HOP + 1
    idx = np.arange(n_frames)[:, None] * HOP + np.arange(FILTER_LENGTH)[None, :]
    frames = padded[:, idx]                                   # (B, n_frames, FL)
    ft = frames @ forward_basis.T                             # (B, n_frames, 2*CUTOFF)
    re, im = ft[..., :CUTOFF], ft[..., CUTOFF:]
    mag = np.sqrt(re * re + im * im)
    phase = np.arctan2(im, re)
    mag_dn = np.maximum(mag - bias[:, :, 0][:, None, :] * strength, 0.0)
    rec = np.concatenate([mag_dn * np.cos(phase), mag_dn * np.sin(phase)], -1)
    contrib = rec @ inverse_basis                             # (B, n_frames, FL)
    out_len = (n_frames - 1) * HOP + FILTER_LENGTH
    out = np.zeros((B, out_len), np.float32)
    for t in range(n_frames):
        out[:, t * HOP:t * HOP + FILTER_LENGTH] += contrib[:, t]
    wsum = window_sumsquare(win, n_frames)
    nzi = wsum > np.finfo(np.float32).tiny
    out[:, nzi] /= wsum[nzi]
    out *= float(FILTER_LENGTH) / HOP
    out = out[:, pad:out_len - pad]
    return out[:, None, :]


# ----------------------------------------------------------------------------
if __name__ == "__main__":
    forward_basis, inverse_basis, win = make_stft_params()

    key = jax.random.PRNGKey(0)
    k_audio, k_bias = jax.random.split(key)
    B, T = 2, 256
    audio = jax.random.normal(k_audio, (B, T), dtype=jnp.float32)

    # TODO(synk): the real module derives bias_spec from waveglow.infer(zeros)
    # followed by an STFT; here it is synthesized deterministically instead.
    bias_spec = jnp.abs(
        jax.random.normal(k_bias, (1, CUTOFF, 1), dtype=jnp.float32)) * 0.5

    out = denoiser_forward(audio, bias_spec, forward_basis, inverse_basis, win,
                           strength=0.1)
    out = jax.block_until_ready(out)

    ref = reference_forward(np.asarray(audio), np.asarray(bias_spec),
                            forward_basis, inverse_basis, win, strength=0.1)

    assert out.shape == (B, 1, T), out.shape
    # Default-precision (bf16 MXU) matmuls + approx reciprocal per the perf review,
    # hence the 5e-2 tolerance (the Precision.HIGHEST version matched at 1e-2).
    assert np.allclose(np.asarray(out), ref, rtol=5e-2, atol=5e-2), (
        "max abs err: %g" % float(np.max(np.abs(np.asarray(out) - ref))))
    print("KERNEL_OK")
</pallas_src>

<mosaic_0001>
module attributes {stable_mosaic.version = 11 : i64} {
  func.func @denoiser_kernel(%arg0: i32, %arg1: memref<48x64xf32, #tpu.memory_space<vmem>>, %arg2: memref<64x128xf32, #tpu.memory_space<vmem>>, %arg3: memref<128x64xf32, #tpu.memory_space<vmem>>, %arg4: memref<1x128xf32, #tpu.memory_space<vmem>>, %arg5: memref<48x16xf32, #tpu.memory_space<vmem>>, %arg6: memref<48x16xf32, #tpu.memory_space<vmem>>) attributes {dimension_semantics = [#tpu.dimension_semantics<arbitrary>], iteration_bounds = array<i64: 1>, scalar_prefetch = 0 : i64, scratch_operands = 0 : i64, tpu.core_type = #tpu.core_type<tc>, window_params = [{pipeline_mode = #tpu.pipeline_mode<synchronous>, transform_indices = @transform_0, window_bounds = array<i64: 48, 64>}, {pipeline_mode = #tpu.pipeline_mode<synchronous>, transform_indices = @transform_1, window_bounds = array<i64: 64, 128>}, {pipeline_mode = #tpu.pipeline_mode<synchronous>, transform_indices = @transform_2, window_bounds = array<i64: 128, 64>}, {pipeline_mode = #tpu.pipeline_mode<synchronous>, transform_indices = @transform_3, window_bounds = array<i64: 1, 128>}, {pipeline_mode = #tpu.pipeline_mode<synchronous>, transform_indices = @transform_4, window_bounds = array<i64: 48, 16>}, {pipeline_mode = #tpu.pipeline_mode<synchronous>, transform_indices = @transform_5, window_bounds = array<i64: 48, 16>}]} {
    %c0 = arith.constant 0 : index
    %c0_0 = arith.constant 0 : index
    %0 = vector.load %arg1[%c0, %c0_0] : memref<48x64xf32, #tpu.memory_space<vmem>>, vector<48x64xf32>
    %c0_1 = arith.constant 0 : index
    %c0_2 = arith.constant 0 : index
    %1 = vector.load %arg2[%c0_1, %c0_2] : memref<64x128xf32, #tpu.memory_space<vmem>>, vector<64x128xf32>
    %cst = arith.constant dense<0.000000e+00> : vector<48x128xf32>
    %2 = tpu.matmul %0, %1, %cst {dimension_numbers = #tpu.dot_dimension_numbers<[1], [0], [0], [1], [0, 0, 1, 1], [], []>} : vector<48x64xf32>, vector<64x128xf32>, vector<48x128xf32> -> vector<48x128xf32>
    %c64_i32 = arith.constant 64 : i32
    %3 = tpu.dynamic_rotate %2 by %c64_i32 dim 1 : vector<48x128xf32>, i32 -> vector<48x128xf32>
    %4 = arith.mulf %2, %2 : vector<48x128xf32>
    %5 = arith.mulf %3, %3 : vector<48x128xf32>
    %6 = arith.addf %4, %5 : vector<48x128xf32>
    %7 = math.sqrt %6 : vector<48x128xf32>
    %cst_3 = arith.constant 0.000000e+00 : f32
    %8 = vector.broadcast %cst_3 : f32 to vector<48x128xf32>
    %9 = arith.cmpf ogt, %7, %8 : vector<48x128xf32>
    %cst_4 = arith.constant 1.000000e+00 : f32
    %10 = vector.broadcast %cst_4 : f32 to vector<48x128xf32>
    %11 = arith.select %9, %7, %10 : vector<48x128xi1>, vector<48x128xf32>
    %c0_5 = arith.constant 0 : index
    %c0_6 = arith.constant 0 : index
    %12 = vector.load %arg4[%c0_5, %c0_6] : memref<1x128xf32, #tpu.memory_space<vmem>>, vector<1x128xf32>
    %13 = vector.broadcast %12 : vector<1x128xf32> to vector<48x128xf32>
    %14 = arith.subf %7, %13 : vector<48x128xf32>
    %cst_7 = arith.constant 0.000000e+00 : f32
    %15 = vector.broadcast %cst_7 : f32 to vector<48x128xf32>
    %16 = arith.maximumf %14, %15 : vector<48x128xf32>
    %17 = tpu.reciprocal %11 {approx = true} : vector<48x128xf32> -> vector<48x128xf32>
    %18 = arith.mulf %16, %17 : vector<48x128xf32>
    %cst_8 = arith.constant 0.000000e+00 : f32
    %19 = vector.broadcast %cst_8 : f32 to vector<48x128xf32>
    %20 = arith.select %9, %18, %19 : vector<48x128xi1>, vector<48x128xf32>
    %21 = arith.mulf %2, %20 : vector<48x128xf32>
    %c0_9 = arith.constant 0 : index
    %c0_10 = arith.constant 0 : index
    %22 = vector.load %arg3[%c0_9, %c0_10] : memref<128x64xf32, #tpu.memory_space<vmem>>, vector<128x64xf32>
    %cst_11 = arith.constant dense<0.000000e+00> : vector<48x64xf32>
    %23 = tpu.matmul %21, %22, %cst_11 {dimension_numbers = #tpu.dot_dimension_numbers<[1], [0], [0], [1], [0, 0, 1, 1], [], []>} : vector<48x128xf32>, vector<128x64xf32>, vector<48x64xf32> -> vector<48x64xf32>
    %24 = vector.extract_strided_slice %23 {offsets = [0, 0], sizes = [24, 64], strides = [1, 1]} : vector<48x64xf32> to vector<24x64xf32>
    %25 = vector.extract_strided_slice %24 {offsets = [0, 0], sizes = [24, 16], strides = [1, 1]} : vector<24x64xf32> to vector<24x16xf32>
    %26 = vector.extract_strided_slice %24 {offsets = [0, 16], sizes = [23, 16], strides = [1, 1]} : vector<24x64xf32> to vector<23x16xf32>
    %cst_12 = arith.constant 0.000000e+00 : f32
    %27 = vector.broadcast %cst_12 : f32 to vector<1x16xf32>
    %28 = tpu.concatenate %27, %26 in 0 : vector<1x16xf32>, vector<23x16xf32> -> vector<24x16xf32>
    %29 = arith.addf %25, %28 : vector<24x16xf32>
    %30 = vector.extract_strided_slice %24 {offsets = [0, 32], sizes = [22, 16], strides = [1, 1]} : vector<24x64xf32> to vector<22x16xf32>
    %cst_13 = arith.constant 0.000000e+00 : f32
    %31 = vector.broadcast %cst_13 : f32 to vector<2x16xf32>
    %32 = tpu.concatenate %31, %30 in 0 : vector<2x16xf32>, vector<22x16xf32> -> vector<24x16xf32>
    %33 = arith.addf %29, %32 : vector<24x16xf32>
    %34 = vector.extract_strided_slice %24 {offsets = [0, 48], sizes = [21, 16], strides = [1, 1]} : vector<24x64xf32> to vector<21x16xf32>
    %cst_14 = arith.constant 0.000000e+00 : f32
    %35 = vector.broadcast %cst_14 : f32 to vector<3x16xf32>
    %36 = tpu.concatenate %35, %34 in 0 : vector<3x16xf32>, vector<21x16xf32> -> vector<24x16xf32>
    %37 = arith.addf %33, %36 : vector<24x16xf32>
    %38 = vector.extract_strided_slice %23 {offsets = [24, 0], sizes = [24, 64], strides = [1, 1]} : vector<48x64xf32> to vector<24x64xf32>
    %39 = vector.extract_strided_slice %38 {offsets = [0, 0], sizes = [24, 16], strides = [1, 1]} : vector<24x64xf32> to vector<24x16xf32>
    %40 = vector.extract_strided_slice %38 {offsets = [0, 16], sizes = [23, 16], strides = [1, 1]} : vector<24x64xf32> to vector<23x16xf32>
    %cst_15 = arith.constant 0.000000e+00 : f32
    %41 = vector.broadcast %cst_15 : f32 to vector<1x16xf32>
    %42 = tpu.concatenate %41, %40 in 0 : vector<1x16xf32>, vector<23x16xf32> -> vector<24x16xf32>
    %43 = arith.addf %39, %42 : vector<24x16xf32>
    %44 = vector.extract_strided_slice %38 {offsets = [0, 32], sizes = [22, 16], strides = [1, 1]} : vector<24x64xf32> to vector<22x16xf32>
    %cst_16 = arith.constant 0.000000e+00 : f32
    %45 = vector.broadcast %cst_16 : f32 to vector<2x16xf32>
    %46 = tpu.concatenate %45, %44 in 0 : vector<2x16xf32>, vector<22x16xf32> -> vector<24x16xf32>
    %47 = arith.addf %43, %46 : vector<24x16xf32>
    %48 = vector.extract_strided_slice %38 {offsets = [0, 48], sizes = [21, 16], strides = [1, 1]} : vector<24x64xf32> to vector<21x16xf32>
    %cst_17 = arith.constant 0.000000e+00 : f32
    %49 = vector.broadcast %cst_17 : f32 to vector<3x16xf32>
    %50 = tpu.concatenate %49, %48 in 0 : vector<3x16xf32>, vector<21x16xf32> -> vector<24x16xf32>
    %51 = arith.addf %47, %50 : vector<24x16xf32>
    %52 = tpu.concatenate %37, %51 in 0 : vector<24x16xf32>, vector<24x16xf32> -> vector<48x16xf32>
    %c0_18 = arith.constant 0 : index
    %c0_19 = arith.constant 0 : index
    %53 = vector.load %arg5[%c0_18, %c0_19] : memref<48x16xf32, #tpu.memory_space<vmem>>, vector<48x16xf32>
    %54 = arith.mulf %52, %53 : vector<48x16xf32>
    %c0_20 = arith.constant 0 : index
    %c0_21 = arith.constant 0 : index
    %55 = vector.load %arg6[%c0_20, %c0_21] : memref<48x16xf32, #tpu.memory_space<vmem>>, vector<48x16xf32>
    tpu.vector_store %arg6[%c0_20, %c0_21], %54 {strides = array<i32>} : memref<48x16xf32, #tpu.memory_space<vmem>>, vector<48x16xf32>,
    return
  }
  func.func @transform_0(%arg0: i32) -> (i32, i32) {
    %c0_i32 = arith.constant 0 : i32
    %c0_i32_0 = arith.constant 0 : i32
    %c0_i32_1 = arith.constant 0 : i32
    return %c0_i32, %c0_i32_0 : i32, i32
  }
  func.func @transform_1(%arg0: i32) -> (i32, i32) {
    %c0_i32 = arith.constant 0 : i32
    %c0_i32_0 = arith.constant 0 : i32
    %c0_i32_1 = arith.constant 0 : i32
    return %c0_i32, %c0_i32_0 : i32, i32
  }
  func.func @transform_2(%arg0: i32) -> (i32, i32) {
    %c0_i32 = arith.constant 0 : i32
    %c0_i32_0 = arith.constant 0 : i32
    %c0_i32_1 = arith.constant 0 : i32
    return %c0_i32, %c0_i32_0 : i32, i32
  }
  func.func @transform_3(%arg0: i32) -> (i32, i32) {
    %c0_i32 = arith.constant 0 : i32
    %c0_i32_0 = arith.constant 0 : i32
    %c0_i32_1 = arith.constant 0 : i32
    return %c0_i32, %c0_i32_0 : i32, i32
  }
  func.func @transform_4(%arg0: i32) -> (i32, i32) {
    %c0_i32 = arith.constant 0 : i32
    %c0_i32_0 = arith.constant 0 : i32
    %c0_i32_1 = arith.constant 0 : i32
    return %c0_i32, %c0_i32_0 : i32, i32
  }
  func.func @transform_5(%arg0: i32) -> (i32, i32) {
    %c0_i32 = arith.constant 0 : i32
    %c0_i32_0 = arith.constant 0 : i32
    %c0_i32_1 = arith.constant 0 : i32
    return %c0_i32, %c0_i32_0 : i32, i32
  }
}

</mosaic_0001>

<llo_original>
// kernel: tpu_custom_call.1
$region0: #{tpu_custom_call.1}
  #allocation0 [shape = 'u32[]', space=smem, size = 0x4, offset = 0x4, fixed_abs, tag = 'smem constant byte address 0x4 - core index']
  #allocation1 [shape = 'u32[72,128]{1,0:T(1,128)}', space=vmem, size = 0x9000, scoped, tag = 'internal scratch']
  %s0 = inlined_call_operand.vmem [shape: f32[48,64], index: 0, kind: input, shape index: {}]
  %s1 = inlined_call_operand.vmem [shape: f32[64,128], index: 1, kind: input, shape index: {}]
  %s2 = inlined_call_operand.vmem [shape: f32[128,64], index: 2, kind: input, shape index: {}]
  %s3 = inlined_call_operand.vmem [shape: f32[1,128], index: 3, kind: input, shape index: {}]
  %s4 = inlined_call_operand.vmem [shape: f32[48,16], index: 4, kind: input, shape index: {}]
  %s5 = inlined_call_operand.vmem [shape: f32[48,16], index: 5, kind: output, shape index: {}]
  %s6 = sld [smem:[#allocation0]]
  $region30: #{tpu_custom_call.1} parent=0
    _
  %s8 = ssub.s32 1, %s6
  %s9 = scalar_select 0, %s8, %s6
  // Predicated region
  $region2: #{tpu_custom_call.1} parent=0 // pred_check
    _
  $region3: #{tpu_custom_call.1} parent=0 // pred_check_branch
    %11 = sbr.rel (0) target = $region5
  $region4: #{tpu_custom_call.1} parent=0 // pred_region
    _
  $region5: #{tpu_custom_call.1} parent=0 // pred_fallthru
    _
  // Predicated region
  $region6: #{tpu_custom_call.1} parent=0 // pred_check
    _
  $region7: #{tpu_custom_call.1} parent=0 // pred_check_branch
    %13 = sbr.rel (0) target = $region9
  $region8: #{tpu_custom_call.1} parent=0 // pred_region
    _
  $region9: #{tpu_custom_call.1} parent=0 // pred_fallthru
    _
  // Predicated region
  $region10: #{tpu_custom_call.1} parent=0 // pred_check
    _
  $region11: #{tpu_custom_call.1} parent=0 // pred_check_branch
    %15 = sbr.rel (0) target = $region13
  $region12: #{tpu_custom_call.1} parent=0 // pred_region
    _
  $region13: #{tpu_custom_call.1} parent=0 // pred_fallthru
    _
  // Predicated region
  $region14: #{tpu_custom_call.1} parent=0 // pred_check
    _
  $region15: #{tpu_custom_call.1} parent=0 // pred_check_branch
    %17 = sbr.rel (0) target = $region17
  $region16: #{tpu_custom_call.1} parent=0 // pred_region
    _
  $region17: #{tpu_custom_call.1} parent=0 // pred_fallthru
    _
  // Predicated region
  $region18: #{tpu_custom_call.1} parent=0 // pred_check
    _
  $region19: #{tpu_custom_call.1} parent=0 // pred_check_branch
    %19 = sbr.rel (0) target = $region21
  $region20: #{tpu_custom_call.1} parent=0 // pred_region
    _
  $region21: #{tpu_custom_call.1} parent=0 // pred_fallthru
    _
  %v20 = vld [vmem:[%s0] sm:$0xff]
  %v21 = vld [vmem:[%s0 + $0x8] sm:$0xff]
  %v22 = vld [vmem:[%s0 + $0x10] sm:$0xff]
  %v23 = vld [vmem:[%s0 + $0x18] sm:$0xff]
  %v24 = vld [vmem:[%s0 + $0x20] sm:$0xff]
  %v25 = vld [vmem:[%s0 + $0x28] sm:$0xff]
  %v26 = vld [vmem:[%s1] sm:$0xff]
  %v27 = vld [vmem:[%s1 + $0x8] sm:$0xff]
  %v28 = vld [vmem:[%s1 + $0x10] sm:$0xff]
  %v29 = vld [vmem:[%s1 + $0x18] sm:$0xff]
  %v30 = vld [vmem:[%s1 + $0x20] sm:$0xff]
  %v31 = vld [vmem:[%s1 + $0x28] sm:$0xff]
  %v32 = vld [vmem:[%s1 + $0x30] sm:$0xff]
  %v33 = vld [vmem:[%s1 + $0x38] sm:$0xff]
  %vm34 = vcmask 523264
  %v36 = vsel %vm34, %v20, 0
  %v39 = vsel %vm34, %v21, 0
  %v42 = vsel %vm34, %v22, 0
  %v45 = vsel %vm34, %v23, 0
  %v48 = vsel %vm34, %v24, 0
  %v51 = vsel %vm34, %v25, 0
  %53 = vmatpush.msra.mxu0 0.0
  %54 = vmatpush.msra.mxu0 0.0
  %55 = vmatpush.msra.mxu0 0.0
  %56 = vmatpush.msra.mxu0 0.0
  %57 = vmatpush.msra.mxu0 0.0
  %58 = vmatpush.msra.mxu0 0.0
  %59 = vmatpush.msra.mxu0 0.0
  %60 = vmatpush.msra.mxu0 0.0
  %61 = vmatpush.msra.mxu0 %v33
  %62 = vmatpush.msra.mxu0 %v32
  %63 = vmatpush.msra.mxu0 %v31
  %64 = vmatpush.msra.mxu0 %v30
  %65 = vmatpush.msra.mxu0 %v29
  %66 = vmatpush.msra.mxu0 %v28
  %67 = vmatpush.msra.mxu0 %v27
  %68 = vmatpush.msra.mxu0 %v26
  %69 = vmatmul.f32.gmra.mxu0 %v36
  %v70 = vpop.f32.mrf.mxu0
  %v71 = vadd.f32 0.0, %v70
  %72 = vmatmul.f32.gmra.mxu0 %v39
  %v73 = vpop.f32.mrf.mxu0
  %v74 = vadd.f32 0.0, %v73
  %75 = vmatmul.f32.gmra.mxu0 %v42
  %v76 = vpop.f32.mrf.mxu0
  %v77 = vadd.f32 0.0, %v76
  %78 = vmatmul.f32.gmra.mxu0 %v45
  %v79 = vpop.f32.mrf.mxu0
  %v80 = vadd.f32 0.0, %v79
  %81 = vmatmul.f32.gmra.mxu0 %v48
  %v82 = vpop.f32.mrf.mxu0
  %v83 = vadd.f32 0.0, %v82
  %84 = vmatmul.f32.gmra.mxu0 %v51
  %v85 = vpop.f32.mrf.mxu0
  %v86 = vadd.f32 0.0, %v85
  %87 = vdwg.mxu0
  %88 = vrot.lane.b32.xlu0 %v71, 64
  %v89 = vpop.permute.xlu0 %88
  %90 = vrot.lane.b32.xlu0 %v74, 64
  %v91 = vpop.permute.xlu0 %90
  %92 = vrot.lane.b32.xlu0 %v77, 64
  %v93 = vpop.permute.xlu0 %92
  %94 = vrot.lane.b32.xlu0 %v80, 64
  %v95 = vpop.permute.xlu0 %94
  %96 = vrot.lane.b32.xlu0 %v83, 64
  %v97 = vpop.permute.xlu0 %96
  %98 = vrot.lane.b32.xlu0 %v86, 64
  %v99 = vpop.permute.xlu0 %98
  %v100 = vmul.f32 %v71, %v71
  %v101 = vmul.f32 %v74, %v74
  %v102 = vmul.f32 %v77, %v77
  %v103 = vmul.f32 %v80, %v80
  %v104 = vmul.f32 %v83, %v83
  %v105 = vmul.f32 %v86, %v86
  %v106 = vmul.f32 %v89, %v89
  %v107 = vmul.f32 %v91, %v91
  %v108 = vmul.f32 %v93, %v93
  %v109 = vmul.f32 %v95, %v95
  %v110 = vmul.f32 %v97, %v97
  %v111 = vmul.f32 %v99, %v99
  %v112 = vadd.f32 %v100, %v106
  %v113 = vadd.f32 %v101, %v107
  %v114 = vadd.f32 %v102, %v108
  %v115 = vadd.f32 %v103, %v109
  %v116 = vadd.f32 %v104, %v110
  %v117 = vadd.f32 %v105, %v111
  %v118 = vrsqrt.pop %v112
  %v119 = vmul.f32 %v118, %v112
  %v120 = vmul.f32 %v119, %v118
  %v121 = vmul.f32 0.5, %v120
  %v122 = vsub.f32 1.5, %v121
  %v123 = vmul.f32 %v118, %v122
  %v124 = vmul.f32 %v112, %v123
  %vm125 = vcmp.eq.f32.partialorder %v112, inf
  %v126 = vsel %vm125, %v112, %v124
  %vm127 = vcmp.eq.f32.partialorder %v112, 0.0
  %v128 = vand.u32 %v112, 2147483648
  %v129 = vsel %vm127, %v128, %v126
  %v130 = vrsqrt.pop %v113
  %v131 = vmul.f32 %v130, %v113
  %v132 = vmul.f32 %v131, %v130
  %v133 = vmul.f32 0.5, %v132
  %v134 = vsub.f32 1.5, %v133
  %v135 = vmul.f32 %v130, %v134
  %v136 = vmul.f32 %v113, %v135
  %vm137 = vcmp.eq.f32.partialorder %v113, inf
  %v138 = vsel %vm137, %v113, %v136
  %vm139 = vcmp.eq.f32.partialorder %v113, 0.0
  %v140 = vand.u32 %v113, 2147483648
  %v141 = vsel %vm139, %v140, %v138
  %v142 = vrsqrt.pop %v114
  %v143 = vmul.f32 %v142, %v114
  %v144 = vmul.f32 %v143, %v142
  %v145 = vmul.f32 0.5, %v144
  %v146 = vsub.f32 1.5, %v145
  %v147 = vmul.f32 %v142, %v146
  %v148 = vmul.f32 %v114, %v147
  %vm149 = vcmp.eq.f32.partialorder %v114, inf
  %v150 = vsel %vm149, %v114, %v148
  %vm151 = vcmp.eq.f32.partialorder %v114, 0.0
  %v152 = vand.u32 %v114, 2147483648
  %v153 = vsel %vm151, %v152, %v150
  %v154 = vrsqrt.pop %v115
  %v155 = vmul.f32 %v154, %v115
  %v156 = vmul.f32 %v155, %v154
  %v157 = vmul.f32 0.5, %v156
  %v158 = vsub.f32 1.5, %v157
  %v159 = vmul.f32 %v154, %v158
  %v160 = vmul.f32 %v115, %v159
  %vm161 = vcmp.eq.f32.partialorder %v115, inf
  %v162 = vsel %vm161, %v115, %v160
  %vm163 = vcmp.eq.f32.partialorder %v115, 0.0
  %v164 = vand.u32 %v115, 2147483648
  %v165 = vsel %vm163, %v164, %v162
  %v166 = vrsqrt.pop %v116
  %v167 = vmul.f32 %v166, %v116
  %v168 = vmul.f32 %v167, %v166
  %v169 = vmul.f32 0.5, %v168
  %v170 = vsub.f32 1.5, %v169
  %v171 = vmul.f32 %v166, %v170
  %v172 = vmul.f32 %v116, %v171
  %vm173 = vcmp.eq.f32.partialorder %v116, inf
  %v174 = vsel %vm173, %v116, %v172
  %vm175 = vcmp.eq.f32.partialorder %v116, 0.0
  %v176 = vand.u32 %v116, 2147483648
  %v177 = vsel %vm175, %v176, %v174
  %v178 = vrsqrt.pop %v117
  %v179 = vmul.f32 %v178, %v117
  %v180 = vmul.f32 %v179, %v178
  %v181 = vmul.f32 0.5, %v180
  %v182 = vsub.f32 1.5, %v181
  %v183 = vmul.f32 %v178, %v182
  %v184 = vmul.f32 %v117, %v183
  %vm185 = vcmp.eq.f32.partialorder %v117, inf
  %v186 = vsel %vm185, %v117, %v184
  %vm187 = vcmp.eq.f32.partialorder %v117, 0.0
  %v188 = vand.u32 %v117, 2147483648
  %v189 = vsel %vm187, %v188, %v186
  %vm190 = vcmp.gt.f32.partialorder %v129, 0.0
  %vm191 = vcmp.gt.f32.partialorder %v141, 0.0
  %vm192 = vcmp.gt.f32.partialorder %v153, 0.0
  %vm193 = vcmp.gt.f32.partialorder %v165, 0.0
  %vm194 = vcmp.gt.f32.partialorder %v177, 0.0
  %vm195 = vcmp.gt.f32.partialorder %v189, 0.0
  %v196 = vsel %vm190, %v129, 1.0
  %v197 = vsel %vm191, %v141, 1.0
  %v198 = vsel %vm192, %v153, 1.0
  %v199 = vsel %vm193, %v165, 1.0
  %v200 = vsel %vm194, %v177, 1.0
  %v201 = vsel %vm195, %v189, 1.0
  %v202 = vld [vmem:[%s3] sm:$0x1]
  %v204 = vperm.slane %v202, 0
  %v206 = vsub.f32 %v129, %v204
  %v207 = vsub.f32 %v141, %v204
  %v208 = vsub.f32 %v153, %v204
  %v209 = vsub.f32 %v165, %v204
  %v210 = vsub.f32 %v177, %v204
  %v211 = vsub.f32 %v189, %v204
  %v212 = vmax.f32 %v206, 0.0
  %v213 = vmax.f32 %v207, 0.0
  %v214 = vmax.f32 %v208, 0.0
  %v215 = vmax.f32 %v209, 0.0
  %v216 = vmax.f32 %v210, 0.0
  %v217 = vmax.f32 %v211, 0.0
  %v218 = vrcp.pop %v196
  %v219 = vrcp.pop %v197
  %v220 = vrcp.pop %v198
  %v221 = vrcp.pop %v199
  %v222 = vrcp.pop %v200
  %v223 = vrcp.pop %v201
  %v224 = vmul.f32 %v212, %v218
  %v225 = vmul.f32 %v213, %v219
  %v226 = vmul.f32 %v214, %v220
  %v227 = vmul.f32 %v215, %v221
  %v228 = vmul.f32 %v216, %v222
  %v229 = vmul.f32 %v217, %v223
  %v230 = vsel %vm190, %v224, 0.0
  %v231 = vsel %vm191, %v225, 0.0
  %v232 = vsel %vm192, %v226, 0.0
  %v233 = vsel %vm193, %v227, 0.0
  %v234 = vsel %vm194, %v228, 0.0
  %v235 = vsel %vm195, %v229, 0.0
  %v236 = vmul.f32 %v71, %v230
  %v237 = vmul.f32 %v74, %v231
  %v238 = vmul.f32 %v77, %v232
  %v239 = vmul.f32 %v80, %v233
  %v240 = vmul.f32 %v83, %v234
  %v241 = vmul.f32 %v86, %v235
  %v242 = vld [vmem:[%s2] sm:$0xff]
  %v243 = vld [vmem:[%s2 + $0x8] sm:$0xff]
  %v244 = vld [vmem:[%s2 + $0x10] sm:$0xff]
  %v245 = vld [vmem:[%s2 + $0x18] sm:$0xff]
  %v246 = vld [vmem:[%s2 + $0x20] sm:$0xff]
  %v247 = vld [vmem:[%s2 + $0x28] sm:$0xff]
  %v248 = vld [vmem:[%s2 + $0x30] sm:$0xff]
  %v249 = vld [vmem:[%s2 + $0x38] sm:$0xff]
  %v250 = vld [vmem:[%s2 + $0x40] sm:$0xff]
  %v251 = vld [vmem:[%s2 + $0x48] sm:$0xff]
  %v252 = vld [vmem:[%s2 + $0x50] sm:$0xff]
  %v253 = vld [vmem:[%s2 + $0x58] sm:$0xff]
  %v254 = vld [vmem:[%s2 + $0x60] sm:$0xff]
  %v255 = vld [vmem:[%s2 + $0x68] sm:$0xff]
  %v256 = vld [vmem:[%s2 + $0x70] sm:$0xff]
  %v257 = vld [vmem:[%s2 + $0x78] sm:$0xff]
  %258 = vmatpush.msra.mxu0 %v257
  %259 = vmatpush.msra.mxu0 %v256
  %260 = vmatpush.msra.mxu0 %v255
  %261 = vmatpush.msra.mxu0 %v254
  %262 = vmatpush.msra.mxu0 %v253
  %263 = vmatpush.msra.mxu0 %v252
  %264 = vmatpush.msra.mxu0 %v251
  %265 = vmatpush.msra.mxu0 %v250
  %266 = vmatpush.msra.mxu0 %v249
  %267 = vmatpush.msra.mxu0 %v248
  %268 = vmatpush.msra.mxu0 %v247
  %269 = vmatpush.msra.mxu0 %v246
  %270 = vmatpush.msra.mxu0 %v245
  %271 = vmatpush.msra.mxu0 %v244
  %272 = vmatpush.msra.mxu0 %v243
  %273 = vmatpush.msra.mxu0 %v242
  %274 = vmatmul.f32.gmra.mxu0 %v236
  %v275 = vpop.f32.mrf.mxu0
  %v276 = vadd.f32 0.0, %v275
  %277 = vmatmul.f32.gmra.mxu0 %v237
  %v278 = vpop.f32.mrf.mxu0
  %v279 = vadd.f32 0.0, %v278
  %280 = vmatmul.f32.gmra.mxu0 %v238
  %v281 = vpop.f32.mrf.mxu0
  %v282 = vadd.f32 0.0, %v281
  %283 = vmatmul.f32.gmra.mxu0 %v239
  %v284 = vpop.f32.mrf.mxu0
  %v285 = vadd.f32 0.0, %v284
  %286 = vmatmul.f32.gmra.mxu0 %v240
  %v287 = vpop.f32.mrf.mxu0
  %v288 = vadd.f32 0.0, %v287
  %289 = vmatmul.f32.gmra.mxu0 %v241
  %v290 = vpop.f32.mrf.mxu0
  %v291 = vadd.f32 0.0, %v290
  %292 = vdwg.mxu0
  %vm296 = vcmask 1040384
  %v297 = vrot.slane %v276, 7
  %v298 = vrot.slane %v279, 7
  %v299 = vsel %vm296, %v297, %v298
  %v300 = vrot.slane %v282, 7
  %v301 = vsel %vm296, %v298, %v300
  %302 = vrot.lane.b32.xlu0 %v297, 112
  %v303 = vpop.permute.xlu0 %302
  %304 = vrot.lane.b32.xlu0 %v299, 112
  %v305 = vpop.permute.xlu0 %304
  %306 = vrot.lane.b32.xlu0 %v301, 112
  %v307 = vpop.permute.xlu0 %306
  %v311 = vsel %vm296, 0.0, %v303
  %v312 = vadd.f32 %v276, %v311
  %v313 = vadd.f32 %v279, %v305
  %v314 = vadd.f32 %v282, %v307
  %vm315 = vcmask 1041408
  %v316 = vrot.slane %v276, 6
  %v317 = vrot.slane %v279, 6
  %v318 = vsel %vm315, %v316, %v317
  %v319 = vrot.slane %v282, 6
  %v320 = vsel %vm315, %v317, %v319
  %321 = vrot.lane.b32.xlu0 %v316, 96
  %v322 = vpop.permute.xlu0 %321
  %323 = vrot.lane.b32.xlu0 %v318, 96
  %v324 = vpop.permute.xlu0 %323
  %325 = vrot.lane.b32.xlu0 %v320, 96
  %v326 = vpop.permute.xlu0 %325
  %v330 = vsel %vm315, 0.0, %v322
  %v331 = vadd.f32 %v312, %v330
  %v332 = vadd.f32 %v313, %v324
  %v333 = vadd.f32 %v314, %v326
  %vm334 = vcmask 1042432
  %v335 = vrot.slane %v276, 5
  %v336 = vrot.slane %v279, 5
  %v337 = vsel %vm334, %v335, %v336
  %v338 = vrot.slane %v282, 5
  %v339 = vsel %vm334, %v336, %v338
  %340 = vrot.lane.b32.xlu0 %v335, 80
  %v341 = vpop.permute.xlu0 %340
  %342 = vrot.lane.b32.xlu0 %v337, 80
  %v343 = vpop.permute.xlu0 %342
  %344 = vrot.lane.b32.xlu0 %v339, 80
  %v345 = vpop.permute.xlu0 %344
  %v349 = vsel %vm334, 0.0, %v341
  %v350 = vadd.f32 %v331, %v349
  %v351 = vadd.f32 %v332, %v343
  %v352 = vadd.f32 %v333, %v345
  %v356 = vrot.slane %v285, 7
  %v357 = vrot.slane %v288, 7
  %v358 = vsel %vm296, %v356, %v357
  %v359 = vrot.slane %v291, 7
  %v360 = vsel %vm296, %v357, %v359
  %361 = vrot.lane.b32.xlu0 %v356, 112
  %v362 = vpop.permute.xlu0 %361
  %363 = vrot.lane.b32.xlu0 %v358, 112
  %v364 = vpop.permute.xlu0 %363
  %365 = vrot.lane.b32.xlu0 %v360, 112
  %v366 = vpop.permute.xlu0 %365
  %v370 = vsel %vm296, 0.0, %v362
  %v371 = vadd.f32 %v285, %v370
  %v372 = vadd.f32 %v288, %v364
  %v373 = vadd.f32 %v291, %v366
  %v374 = vrot.slane %v285, 6
  %v375 = vrot.slane %v288, 6
  %v376 = vsel %vm315, %v374, %v375
  %v377 = vrot.slane %v291, 6
  %v378 = vsel %vm315, %v375, %v377
  %379 = vrot.lane.b32.xlu0 %v374, 96
  %v380 = vpop.permute.xlu0 %379
  %381 = vrot.lane.b32.xlu0 %v376, 96
  %v382 = vpop.permute.xlu0 %381
  %383 = vrot.lane.b32.xlu0 %v378, 96
  %v384 = vpop.permute.xlu0 %383
  %v388 = vsel %vm315, 0.0, %v380
  %v389 = vadd.f32 %v371, %v388
  %v390 = vadd.f32 %v372, %v382
  %v391 = vadd.f32 %v373, %v384
  %v392 = vrot.slane %v285, 5
  %v393 = vrot.slane %v288, 5
  %v394 = vsel %vm334, %v392, %v393
  %v395 = vrot.slane %v291, 5
  %v396 = vsel %vm334, %v393, %v395
  %397 = vrot.lane.b32.xlu0 %v392, 80
  %v398 = vpop.permute.xlu0 %397
  %399 = vrot.lane.b32.xlu0 %v394, 80
  %v400 = vpop.permute.xlu0 %399
  %401 = vrot.lane.b32.xlu0 %v396, 80
  %v402 = vpop.permute.xlu0 %401
  %v406 = vsel %vm334, 0.0, %v398
  %v407 = vadd.f32 %v389, %v406
  %v408 = vadd.f32 %v390, %v400
  %v409 = vadd.f32 %v391, %v402
  %v410 = vld [vmem:[%s4] sm:$0xff]
  %v411 = vld [vmem:[%s4 + $0x8] sm:$0xff]
  %v412 = vld [vmem:[%s4 + $0x10] sm:$0xff]
  %v413 = vld [vmem:[%s4 + $0x18] sm:$0xff]
  %v414 = vld [vmem:[%s4 + $0x20] sm:$0xff]
  %v415 = vld [vmem:[%s4 + $0x28] sm:$0xff]
  %v416 = vmul.f32 %v350, %v410
  %v417 = vmul.f32 %v351, %v411
  %v418 = vmul.f32 %v352, %v412
  %v419 = vmul.f32 %v407, %v413
  %v420 = vmul.f32 %v408, %v414
  %v421 = vmul.f32 %v409, %v415
  %vm422 = vcmask 130048
  %423 = vst.msk [vmem:[%s5] sm:$0xff] %vm422, %v416
  %424 = vst.msk [vmem:[%s5 + $0x8] sm:$0xff] %vm422, %v417
  %425 = vst.msk [vmem:[%s5 + $0x10] sm:$0xff] %vm422, %v418
  %426 = vst.msk [vmem:[%s5 + $0x18] sm:$0xff] %vm422, %v419
  %427 = vst.msk [vmem:[%s5 + $0x20] sm:$0xff] %vm422, %v420
  %428 = vst.msk [vmem:[%s5 + $0x28] sm:$0xff] %vm422, %v421
  // Predicated region
  $region22: #{tpu_custom_call.1} parent=0 // pred_check
    _
  $region23: #{tpu_custom_call.1} parent=0 // pred_check_branch
    %430 = sbr.rel (0) target = $region25
  $region24: #{tpu_custom_call.1} parent=0 // pred_region
    _
  $region25: #{tpu_custom_call.1} parent=0 // pred_fallthru
    _
  // Predicated region
  $region26: #{tpu_custom_call.1} parent=0 // pred_check
    _
  $region27: #{tpu_custom_call.1} parent=0 // pred_check_branch
    %432 = sbr.rel (0) target = $region29
  $region28: #{tpu_custom_call.1} parent=0 // pred_region
    _
  $region29: #{tpu_custom_call.1} parent=0 // pred_fallthru
    _

</llo_original>
